<compile_context>
chip_gen: v6e
topology: v6e:2x2x1
jax: 0.10.0
libtpu: 0.0.40
codegen_flags: <defaults>
</compile_context>

<pallas_src>
import functools

import jax
import jax.numpy as jnp
from jax.experimental import pallas as pl
from jax.experimental.pallas import tpu as pltpu

# ------------------------- config (small, deterministic) -------------------------
B = 2            # batch
T = 16           # configs.seq_len
N_VAR = 4        # number of variates (input channels N)
D_MODEL = 32     # configs.d_model
LAYERS = 2       # configs.layer
CLASSES = 2      # configs.classes  -> out_dim = 1
OUT_DIM = 1 if CLASSES == 2 else CLASSES
USE_NORM = True
MA_KERNEL = 5    # moving-average window of the surrogate decomposition
EPS = 1e-5


def _moving_avg_lastdim(x, k):
    """Replicate-padded moving average along the last dim (static window k)."""
    pad_l = (k - 1) // 2
    pad_r = k - 1 - pad_l
    left = jnp.broadcast_to(x[..., :1], x.shape[:-1] + (pad_l,))
    right = jnp.broadcast_to(x[..., -1:], x.shape[:-1] + (pad_r,))
    xp = jnp.concatenate([left, x, right], axis=-1)
    d = x.shape[-1]
    acc = xp[..., 0:d]
    for i in range(1, k):
        acc = acc + xp[..., i:i + d]
    return acc / float(k)


# ----------------------------------- kernel -----------------------------------
def deci_kernel(x_ref, w_ref, b_ref, y_ref, *, use_norm, inv_n):
    # x: (B, N, T)   w: (1, T) folded weight vector   b: (1, 1) SMEM scalar bias.
    x = x_ref[...].astype(jnp.float32)

    # Per-(batch, variate) normalization over time (last/lane dim).
    if use_norm:
        mu = jnp.mean(x, axis=-1, keepdims=True)
        xc = x - mu
        var = jnp.mean(xc * xc, axis=-1, keepdims=True)      # unbiased=False
        x = xc * jax.lax.rsqrt(var + EPS)                    # EUP rsqrt + VPU mul

    # Folded affine chain: per-variate score = <x_row, w_eff>.
    w = w_ref[...].reshape((1, 1, -1))                        # (1, 1, T)
    p = x * w                                                 # VPU elementwise
    s = jnp.sum(p, axis=-1)                                   # (B, N) lane reduce
    y = jnp.sum(s, axis=-1, keepdims=True) * inv_n            # variate mean -> (B, 1)
    y = y + b_ref[0, 0]                                       # folded bias (SMEM scalar)

    # out_dim == 1  =>  sigmoid.
    # TODO(synk): out_dim > 1 (classes > 2) would need a (T, out_dim) w_eff and no sigmoid.
    y_ref[...] = 1.0 / (1.0 + jnp.exp(-y))


# ----------------------------- host-side weight fold -----------------------------
def fold_params(we, be, wt, bt, ws, bs, wr, br):
    """Fold embedding + all decomposition blocks + heads + variate mean into
    a single (T, OUT_DIM) vector and an (OUT_DIM,) bias (valid: chain is affine)."""
    eye = jnp.eye(D_MODEL, dtype=jnp.float32)
    A = _moving_avg_lastdim(eye, MA_KERNEL)        # res @ A == moving_avg(res)
    IA = eye - A

    H = jnp.zeros((D_MODEL, OUT_DIM), jnp.float32)   # sum_l M_l @ h_l
    c = jnp.zeros((OUT_DIM,), jnp.float32)           # sum_l (v_l @ h_l + bt_l + bs_l)
    M = eye                                          # running residual map (M_0 = I)
    v = jnp.zeros((1, D_MODEL), jnp.float32)         # running residual bias (v_0 = 0)
    for l in range(LAYERS):
        h_l = A @ wt[l] + IA @ ws[l]                 # (D, OUT_DIM) merged head
        H = H + M @ h_l
        c = c + (v @ h_l)[0] + bt[l][0] + bs[l][0]
        if l + 1 < LAYERS:                           # last residual is unused
            R_l = IA @ wr[l]                         # (D, D) residual map
            v = v @ R_l + br[l]
            M = M @ R_l

    w_eff = we @ H                                   # (T, OUT_DIM)
    b_eff = (be @ H)[0] + c                          # (OUT_DIM,)
    return (w_eff.T.astype(jnp.float32),             # (OUT_DIM, T) == (1, T)
            b_eff.reshape(1, OUT_DIM).astype(jnp.float32))


# ----------------------------------- wrapper -----------------------------------
def _deci_forward(x, w_row, b_eff):
    Bx, Tx, Nx = x.shape
    # Layout plumbing only: (B, T, N) -> (B, N, T); fused into the same executable by jit.
    x3 = jnp.transpose(x, (0, 2, 1))
    kern = functools.partial(deci_kernel, use_norm=USE_NORM, inv_n=1.0 / Nx)
    vmem = pl.BlockSpec(memory_space=pltpu.MemorySpace.VMEM)
    smem = pl.BlockSpec(memory_space=pltpu.MemorySpace.SMEM)
    return pl.pallas_call(
        kern,
        out_shape=jax.ShapeDtypeStruct((Bx, OUT_DIM), jnp.float32),
        in_specs=[vmem, vmem, smem],
        out_specs=vmem,
    )(x3, w_row, b_eff)


deci_forward = jax.jit(_deci_forward)


# ------------------------------ pure-JAX reference ------------------------------
def deci_reference(x, params):
    we, be, wt, bt, ws, bs, wr, br = params
    if USE_NORM:
        means = jnp.mean(x, axis=1, keepdims=True)
        x = x - means
        var = jnp.mean(x * x, axis=1, keepdims=True)
        x = x / jnp.sqrt(var + EPS)
    res = jnp.einsum("btn,td->bnd", x, we) + be
    y = jnp.zeros((x.shape[0], OUT_DIM), jnp.float32)
    for l in range(LAYERS):
        trend_comp = _moving_avg_lastdim(res, MA_KERNEL)
        seasonal_comp = res - trend_comp
        trend = jnp.einsum("bnd,dc->bnc", trend_comp, wt[l]) + bt[l]
        seasonal = jnp.einsum("bnd,dc->bnc", seasonal_comp, ws[l]) + bs[l]
        res = jnp.einsum("bnd,de->bne", seasonal_comp, wr[l]) + br[l]
        y = y + jnp.mean(trend, axis=1) + jnp.mean(seasonal, axis=1)
    return jax.nn.sigmoid(y) if OUT_DIM == 1 else y


# ----------------------------------- main -----------------------------------
if __name__ == "__main__":
    key = jax.random.PRNGKey(0)
    kx, kp = jax.random.split(key)
    x_enc = jax.random.normal(kx, (B, T, N_VAR), dtype=jnp.float32)

    k = jax.random.split(kp, 8)
    we = 0.1 * jax.random.normal(k[0], (T, D_MODEL), jnp.float32)   # Linear(seq_len, d_model)
    be = 0.1 * jax.random.normal(k[1], (1, D_MODEL), jnp.float32)
    wt = 0.1 * jax.random.normal(k[2], (LAYERS, D_MODEL, OUT_DIM), jnp.float32)
    bt = 0.1 * jax.random.normal(k[3], (LAYERS, 1, OUT_DIM), jnp.float32)
    ws = 0.1 * jax.random.normal(k[4], (LAYERS, D_MODEL, OUT_DIM), jnp.float32)
    bs = 0.1 * jax.random.normal(k[5], (LAYERS, 1, OUT_DIM), jnp.float32)
    wr = 0.1 * jax.random.normal(k[6], (LAYERS, D_MODEL, D_MODEL), jnp.float32)
    br = 0.1 * jax.random.normal(k[7], (LAYERS, 1, D_MODEL), jnp.float32)
    params = (we, be, wt, bt, ws, bs, wr, br)

    w_row, b_eff = fold_params(*params)
    y = jax.block_until_ready(deci_forward(x_enc, w_row, b_eff))

    y_ref = jax.block_until_ready(deci_reference(x_enc, params))
    assert y.shape == (B, OUT_DIM), y.shape
    assert jnp.allclose(y, y_ref, atol=1e-5, rtol=1e-4), (y, y_ref)

    print("KERNEL_OK")
</pallas_src>

<mosaic_0001>
module attributes {stable_mosaic.version = 11 : i64} {
  func.func @deci_kernel(%arg0: memref<2x4x16xf32, #tpu.memory_space<vmem>>, %arg1: memref<1x16xf32, #tpu.memory_space<vmem>>, %arg2: memref<1x1xf32, #tpu.memory_space<smem>>, %arg3: memref<2x1xf32, #tpu.memory_space<vmem>>) attributes {dimension_semantics = [], scalar_prefetch = 0 : i64, scratch_operands = 0 : i64, tpu.core_type = #tpu.core_type<tc>} {
    %c0 = arith.constant 0 : index
    %c0_0 = arith.constant 0 : index
    %c0_1 = arith.constant 0 : index
    %0 = vector.load %arg0[%c0, %c0_0, %c0_1] : memref<2x4x16xf32, #tpu.memory_space<vmem>>, vector<2x4x16xf32>
    %cst = arith.constant dense<0.000000e+00> : vector<2x4xf32>
    %1 = vector.multi_reduction <add>, %0, %cst [2] : vector<2x4x16xf32> to vector<2x4xf32>
    %2 = vector.shape_cast %1 : vector<2x4xf32> to vector<2x4x1xf32>
    %cst_2 = arith.constant 1.600000e+01 : f32
    %3 = vector.broadcast %cst_2 : f32 to vector<2x4x1xf32>
    %4 = arith.divf %2, %3 : vector<2x4x1xf32>
    %5 = vector.broadcast %4 : vector<2x4x1xf32> to vector<2x4x16xf32>
    %6 = arith.subf %0, %5 : vector<2x4x16xf32>
    %7 = arith.mulf %6, %6 : vector<2x4x16xf32>
    %cst_3 = arith.constant dense<0.000000e+00> : vector<2x4xf32>
    %8 = vector.multi_reduction <add>, %7, %cst_3 [2] : vector<2x4x16xf32> to vector<2x4xf32>
    %9 = vector.shape_cast %8 : vector<2x4xf32> to vector<2x4x1xf32>
    %cst_4 = arith.constant 1.600000e+01 : f32
    %10 = vector.broadcast %cst_4 : f32 to vector<2x4x1xf32>
    %11 = arith.divf %9, %10 : vector<2x4x1xf32>
    %cst_5 = arith.constant 9.99999974E-6 : f32
    %12 = vector.broadcast %cst_5 : f32 to vector<2x4x1xf32>
    %13 = arith.addf %11, %12 : vector<2x4x1xf32>
    %14 = math.rsqrt %13 : vector<2x4x1xf32>
    %15 = vector.broadcast %14 : vector<2x4x1xf32> to vector<2x4x16xf32>
    %16 = arith.mulf %6, %15 : vector<2x4x16xf32>
    %c0_6 = arith.constant 0 : index
    %c0_7 = arith.constant 0 : index
    %17 = vector.load %arg1[%c0_6, %c0_7] : memref<1x16xf32, #tpu.memory_space<vmem>>, vector<1x16xf32>
    %18 = vector.shape_cast %17 : vector<1x16xf32> to vector<1x1x16xf32>
    %19 = vector.broadcast %18 : vector<1x1x16xf32> to vector<2x4x16xf32>
    %20 = arith.mulf %16, %19 : vector<2x4x16xf32>
    %cst_8 = arith.constant dense<0.000000e+00> : vector<2x4xf32>
    %21 = vector.multi_reduction <add>, %20, %cst_8 [2] : vector<2x4x16xf32> to vector<2x4xf32>
    %cst_9 = arith.constant dense<0.000000e+00> : vector<2xf32>
    %22 = vector.multi_reduction <add>, %21, %cst_9 [1] : vector<2x4xf32> to vector<2xf32>
    %23 = vector.shape_cast %22 : vector<2xf32> to vector<2x1xf32>
    %cst_10 = arith.constant 2.500000e-01 : f32
    %24 = vector.broadcast %cst_10 : f32 to vector<2x1xf32>
    %25 = arith.mulf %23, %24 : vector<2x1xf32>
    %c0_11 = arith.constant 0 : index
    %c0_12 = arith.constant 0 : index
    %26 = memref.load %arg2[%c0_11, %c0_12] : memref<1x1xf32, #tpu.memory_space<smem>>
    %27 = vector.broadcast %26 : f32 to vector<2x1xf32>
    %28 = arith.addf %25, %27 : vector<2x1xf32>
    %cst_13 = arith.constant 0.000000e+00 : f32
    %29 = vector.broadcast %cst_13 : f32 to vector<2x1xf32>
    %30 = arith.subf %29, %28 : vector<2x1xf32>
    %31 = math.exp %30 : vector<2x1xf32>
    %cst_14 = arith.constant 1.000000e+00 : f32
    %32 = vector.broadcast %cst_14 : f32 to vector<2x1xf32>
    %33 = arith.addf %32, %31 : vector<2x1xf32>
    %cst_15 = arith.constant 1.000000e+00 : f32
    %34 = vector.broadcast %cst_15 : f32 to vector<2x1xf32>
    %35 = arith.divf %34, %33 : vector<2x1xf32>
    %c0_16 = arith.constant 0 : index
    %c0_17 = arith.constant 0 : index
    %36 = vector.load %arg3[%c0_16, %c0_17] : memref<2x1xf32, #tpu.memory_space<vmem>>, vector<2x1xf32>
    tpu.vector_store %arg3[%c0_16, %c0_17], %35 {strides = array<i32>} : memref<2x1xf32, #tpu.memory_space<vmem>>, vector<2x1xf32>,
    return
  }
}

</mosaic_0001>

<llo_original>
// kernel: _deci_forward.1
$region0: #{_deci_forward.1}
  #allocation0 [shape = 'u32[]', space=smem, size = 0x4, offset = 0x4, fixed_abs, tag = 'smem constant byte address 0x4 - core index']
  #allocation1 [shape = 'u32[144,128]{1,0:T(1,128)}', space=vmem, size = 0x12000, scoped, tag = 'internal scratch']
  #allocation2 [shape = 'f32[1,1]{1,0:T(1,128)S(6)}', space=smem, size = 0x200, scoped, tag = 'scoped memory for _deci_forward.1']
  %s0 = inlined_call_operand.hbm [shape: f32[2,4,16], index: 0, kind: input, shape index: {}]
  %s1 = inlined_call_operand.vmem [shape: f32[1,16], index: 1, kind: input, shape index: {}]
  %s2 = inlined_call_operand.<no memory space> [shape: f32[1,1], index: 2, kind: input, shape index: {}]
  %s3 = inlined_call_operand.vmem [shape: f32[2,1], index: 3, kind: output, shape index: {}]
  %s4 = sld [smem:[#allocation0]]
  $region26: #{_deci_forward.1} parent=0
    _
  %s6 = ssub.s32 1, %s4
  %s7 = scalar_select 0, %s6, %s4
  %8 = sst [smem:[#allocation2]] %s2
  $region1: #{_deci_forward.1} parent=0
    #allocation3 [shape = 'u8[4096]{0}', space=vmem, size = 0x1000, scoped, tag = 'input window, operand 0, single buffered']
    #allocation4 [shape = 's32[1]{0}', space=sflag, size = 0x4, scoped, tag = 'scoped memory for _deci_forward.1']
    %9 = vsyncpa [#allocation4], 0
    // Predicated region
    $region2: #{_deci_forward.1} parent=1 // pred_check
      _
    $region3: #{_deci_forward.1} parent=1 // pred_check_branch
      %11 = sbr.rel (0) target = $region5
    $region4: #{_deci_forward.1} parent=1 // pred_region
      %s13 = ssub.s32 128, 128
      %14 = vsyncadd [#allocation4], %s13
      %s15 = sshll.u32 [#allocation3], 4
      %s16 = int_to_ptr.vmem [resolvable:$true] %s15
      %21 = dma.hbm_to_vmem [thread:$0]  %s0, 128, %s16, [#allocation4], 64, 64, 4
    $region5: #{_deci_forward.1} parent=1 // pred_fallthru
      _
    // Predicated region
    $region6: #{_deci_forward.1} parent=1 // pred_check
      _
    $region7: #{_deci_forward.1} parent=1 // pred_check_branch
      %23 = sbr.rel (0) target = $region9
    $region8: #{_deci_forward.1} parent=1 // pred_region
      _
    $region9: #{_deci_forward.1} parent=1 // pred_fallthru
      _
    // Predicated region
    $region10: #{_deci_forward.1} parent=1 // pred_check
      _
    $region11: #{_deci_forward.1} parent=1 // pred_check_branch
      %25 = sbr.rel (0) target = $region13
    $region12: #{_deci_forward.1} parent=1 // pred_region
      _
    $region13: #{_deci_forward.1} parent=1 // pred_fallthru
      _
    // Predicated region
    $region14: #{_deci_forward.1} parent=1 // pred_check
      _
    $region15: #{_deci_forward.1} parent=1 // pred_check_branch
      %27 = sbr.rel (0) target = $region17
    $region16: #{_deci_forward.1} parent=1 // pred_region
      %28 = dma.done [#allocation4], 128
    $region17: #{_deci_forward.1} parent=1 // pred_fallthru
      _
    %v29 = vld [vmem:[#allocation3] sm:$0xf]
    %v30 = vld [vmem:[#allocation3 + $0x4] sm:$0xf]
    %vm31 = vcmask 125952
    %v32 = vsel %vm31, %v29, 0.0
    %33 = vadd.xlane.f32.xlu0 %v32
    %v34 = vpop.xlane.xlu0 %33
    %v35 = vsel %vm31, %v30, 0.0
    %36 = vadd.xlane.f32.xlu0 %v35
    %v37 = vpop.xlane.xlu0 %36
    %v38 = vrcp.pop 16.0
    %v39 = vmul.f32 %v34, %v38
    %v40 = vmul.f32 %v37, %v38
    %v41 = vsub.f32 %v29, %v39
    %v42 = vsub.f32 %v30, %v40
    %v43 = vmul.f32 %v41, %v41
    %v44 = vmul.f32 %v42, %v42
    %v45 = vsel %vm31, %v43, 0.0
    %46 = vadd.xlane.f32.xlu0 %v45
    %v47 = vpop.xlane.xlu0 %46
    %v48 = vsel %vm31, %v44, 0.0
    %49 = vadd.xlane.f32.xlu0 %v48
    %v50 = vpop.xlane.xlu0 %49
    %v51 = vmul.f32 %v47, %v38
    %v52 = vmul.f32 %v50, %v38
    %v53 = vadd.f32 %v51, 1e-05
    %v54 = vadd.f32 %v52, 1e-05
    %v55 = vrsqrt.pop %v53
    %v56 = vrsqrt.pop %v54
    %v57 = vmul.f32 %v41, %v55
    %v58 = vmul.f32 %v42, %v56
    %v59 = vld [vmem:[%s1] sm:$0x1]
    %v61 = vlaneseq
    %v62 = vshrl.u32 %v61, 7
    %v63 = vsub.s32 0, %v62
    %v64 = vrot.slane %v59, %v63
    %v66 = vmul.f32 %v57, %v64
    %v67 = vmul.f32 %v58, %v64
    %v68 = vsel %vm31, %v66, 0.0
    %69 = vadd.xlane.f32.xlu0 %v68
    %v70 = vpop.xlane.xlu0 %69
    %v71 = vsel %vm31, %v67, 0.0
    %72 = vadd.xlane.f32.xlu0 %v71
    %v73 = vpop.xlane.xlu0 %72
    %v76 = vlaneseq
    %v77 = vand.u32 %v76, 127
    %v78 = vlaneseq
    %v79 = vshrl.u32 %v78, 7
    %v80 = vsub.s32 %v77, %v79
    %v81 = vrot.slane %v70, %v80
    %v82 = vlaneseq
    %v83 = vshrl.u32 %v82, 7
    %v84 = vsub.s32 %v77, %v83
    %v85 = vrot.slane %v73, %v84
    %vm86 = vcmask 1041409
    %v87 = vsel %vm86, %v85, %v81
    %vm89 = vcmask 25600
    %v90 = vsel %vm89, %v87, 0.0
    %91 = vadd.xlane.f32.xlu0 %v90
    %v92 = vpop.xlane.xlu0 %91
    %v93 = vmul.f32 %v92, 0.25
    %s94 = sld [smem:[#allocation2]]
    %v95 = vstv %s94
    %v96 = vadd.f32 %v93, %v95
    %v97 = vsub.f32 0.0, %v96
    %v98 = vmul.f32 %v97, 1.442695
    %v99 = vpow.pop %v98
    %v100 = vadd.f32 %v99, 1.0
    %v101 = vrcp.pop %v100
    %v102 = vmul.f32 1.0, %v101
    %vm103 = vcmask 1024
    %104 = vst.msk [vmem:[%s3] sm:$0x3] %vm103, %v102
    // Predicated region
    $region18: #{_deci_forward.1} parent=1 // pred_check
      _
    $region19: #{_deci_forward.1} parent=1 // pred_check_branch
      %106 = sbr.rel (0) target = $region21
    $region20: #{_deci_forward.1} parent=1 // pred_region
      _
    $region21: #{_deci_forward.1} parent=1 // pred_fallthru
      _
    // Predicated region
    $region22: #{_deci_forward.1} parent=1 // pred_check
      _
    $region23: #{_deci_forward.1} parent=1 // pred_check_branch
      %108 = sbr.rel (0) target = $region25
    $region24: #{_deci_forward.1} parent=1 // pred_region
      _
    $region25: #{_deci_forward.1} parent=1 // pred_fallthru
      _
    %109 = vsyncpa [#allocation4], 1

</llo_original>
